<compile_context>
chip_gen: v6e
topology: v6e:2x2x1
jax: 0.10.0
libtpu: 0.0.40
codegen_flags: <defaults>
</compile_context>

<pallas_src>
import jax
import jax.numpy as jnp
from jax.experimental import pallas as pl
from jax.experimental.pallas import tpu as pltpu

STATE_SPACE = 4
ACTION_SPACE = 2
HIDDEN = 64
OUT_PAD = 128          # lane-dense padded head width
TILE_B = 1024          # batch tile (rows); shrunk automatically for small B
ROOT_2 = 2.0 ** 0.5


def _xavier_normal(key, fan_in, fan_out, gain):
    # torch.nn.init.xavier_normal_: std = gain * sqrt(2 / (fan_in + fan_out))
    std = gain * (2.0 / (fan_in + fan_out)) ** 0.5
    # Stored as (in, out) so the kernel computes x @ W  (== x @ W_pt.T).
    return std * jax.random.normal(key, (fan_in, fan_out), dtype=jnp.float32)


def init_actor_params(key):
    k1, k2, k3 = jax.random.split(key, 3)
    return {
        "w1": _xavier_normal(k1, STATE_SPACE, HIDDEN, ROOT_2),
        "b1": jnp.zeros((1, HIDDEN), jnp.float32),
        "w2": _xavier_normal(k2, HIDDEN, HIDDEN, ROOT_2),
        "b2": jnp.zeros((1, HIDDEN), jnp.float32),
        "w3": _xavier_normal(k3, HIDDEN, ACTION_SPACE, 0.01),
        "b3": jnp.zeros((1, ACTION_SPACE), jnp.float32),
    }


def actor_kernel(x_ref, w1_ref, b1_ref, w2_ref, b2_ref, w3_ref, b3_ref, o_ref):
    # x_ref: (TB, 4) f32   w1: (4,64) f32   b1: (1,64) f32
    # w2: (64,64) bf16     b2: (1,64) f32
    # w3: (64,128) bf16 (zero-padded cols 2..127)   b3: (1,128) f32 (padded)
    x = x_ref[...]
    w1 = w1_ref[...]

    # ---- Layer 1 on the VPU: K=4 outer-product FMAs (skip the padded MXU pass).
    acc = x[:, 0:1] * w1[0:1, :]
    for k in range(1, STATE_SPACE):
        acc = acc + x[:, k:k + 1] * w1[k:k + 1, :]
    h1 = jnp.tanh(acc + b1_ref[...])                       # (TB, 64) f32

    # ---- Layer 2 on the MXU: bf16 operands, f32 accumulation.
    h2 = jnp.tanh(
        jnp.dot(h1.astype(jnp.bfloat16), w2_ref[...],
                preferred_element_type=jnp.float32) + b2_ref[...]
    )                                                      # (TB, 64) f32

    # ---- Layer 3 (head), lane-padded to 128 columns for an unmasked store.
    logits = (
        jnp.dot(h2.astype(jnp.bfloat16), w3_ref[...],
                preferred_element_type=jnp.float32) + b3_ref[...]
    )                                                      # (TB, 128) f32
    o_ref[...] = logits.astype(o_ref.dtype)


def actor_forward(params, x, tile_b=TILE_B):
    # x: (B, ...) -> flatten trailing dims, exactly like x.view(x.size(0), -1)
    B = x.shape[0]
    x2d = x.reshape(B, -1).astype(jnp.float32)
    assert x2d.shape[1] == STATE_SPACE, "flattened input must have 4 features"

    # Tile the batch; keep the block a multiple of 8 sublanes.
    b8 = ((B + 7) // 8) * 8
    tb = min(tile_b, b8)
    grid = (pl.cdiv(B, tb),)

    # Pre-cast MXU weights to bf16; zero-pad the head to 128 output lanes.
    w2_bf = params["w2"].astype(jnp.bfloat16)
    w3_pad = jnp.zeros((HIDDEN, OUT_PAD), jnp.bfloat16)
    w3_pad = w3_pad.at[:, :ACTION_SPACE].set(params["w3"].astype(jnp.bfloat16))
    b3_pad = jnp.zeros((1, OUT_PAD), jnp.float32)
    b3_pad = b3_pad.at[:, :ACTION_SPACE].set(params["b3"])

    const = lambda i: (0, 0)   # weights/biases: same block every step -> VMEM-resident

    out_padded = pl.pallas_call(
        actor_kernel,
        out_shape=jax.ShapeDtypeStruct((B, OUT_PAD), jnp.float32),
        grid=grid,
        in_specs=[
            pl.BlockSpec((tb, STATE_SPACE), lambda i: (i, 0)),   # x tile
            pl.BlockSpec((STATE_SPACE, HIDDEN), const),          # w1
            pl.BlockSpec((1, HIDDEN), const),                    # b1
            pl.BlockSpec((HIDDEN, HIDDEN), const),               # w2 (bf16)
            pl.BlockSpec((1, HIDDEN), const),                    # b2
            pl.BlockSpec((HIDDEN, OUT_PAD), const),              # w3 (bf16, padded)
            pl.BlockSpec((1, OUT_PAD), const),                   # b3 (padded)
        ],
        out_specs=pl.BlockSpec((tb, OUT_PAD), lambda i: (i, 0)),
        compiler_params=pltpu.CompilerParams(
            dimension_semantics=("parallel",),
            vmem_limit_bytes=32 * 1024 * 1024,
        ),
    )(x2d, params["w1"], params["b1"], w2_bf, params["b2"], w3_pad, b3_pad)

    return out_padded[:, :ACTION_SPACE]


def actor_forward_ref(params, x):
    # Pure-JAX f32 reference (exact PyTorch-module semantics).
    B = x.shape[0]
    h = x.reshape(B, -1).astype(jnp.float32)
    h = jnp.tanh(h @ params["w1"] + params["b1"])
    h = jnp.tanh(h @ params["w2"] + params["b2"])
    return h @ params["w3"] + params["b3"]


if __name__ == "__main__":
    key = jax.random.PRNGKey(0)
    pkey, xkey = jax.random.split(key)
    params = init_actor_params(pkey)

    # Small batch (B=8, single tile) + a multi-tile batch with a ragged tail
    # (B=1040 -> 2 grid steps with TILE_B=1024) to exercise the pipeline/masking.
    for B in (8, 1040):
        x = jax.random.normal(jax.random.fold_in(xkey, B),
                              (B, STATE_SPACE), dtype=jnp.float32)
        out = jax.block_until_ready(actor_forward(params, x))
        ref = actor_forward_ref(params, x)
        assert out.shape == (B, ACTION_SPACE)
        # bf16 MXU operands with f32 accumulation: logit error ~1e-4 absolute.
        assert jnp.allclose(out, ref, atol=2e-3, rtol=5e-2), f"mismatch at B={B}"

    print("KERNEL_OK")
</pallas_src>

<mosaic_0001>
module attributes {stable_mosaic.version = 11 : i64} {
  func.func @actor_kernel(%arg0: i32, %arg1: memref<8x4xf32, #tpu.memory_space<vmem>>, %arg2: memref<4x64xf32, #tpu.memory_space<vmem>>, %arg3: memref<1x64xf32, #tpu.memory_space<vmem>>, %arg4: memref<64x64xbf16, #tpu.memory_space<vmem>>, %arg5: memref<1x64xf32, #tpu.memory_space<vmem>>, %arg6: memref<64x128xbf16, #tpu.memory_space<vmem>>, %arg7: memref<1x128xf32, #tpu.memory_space<vmem>>, %arg8: memref<8x128xf32, #tpu.memory_space<vmem>>) attributes {dimension_semantics = [#tpu.dimension_semantics<parallel>], iteration_bounds = array<i64: 1>, scalar_prefetch = 0 : i64, scratch_operands = 0 : i64, tpu.core_type = #tpu.core_type<tc>, window_params = [{transform_indices = @transform_0, window_bounds = array<i64: 8, 4>}, {pipeline_mode = #tpu.pipeline_mode<synchronous>, transform_indices = @transform_1, window_bounds = array<i64: 4, 64>}, {pipeline_mode = #tpu.pipeline_mode<synchronous>, transform_indices = @transform_2, window_bounds = array<i64: 1, 64>}, {pipeline_mode = #tpu.pipeline_mode<synchronous>, transform_indices = @transform_3, window_bounds = array<i64: 64, 64>}, {pipeline_mode = #tpu.pipeline_mode<synchronous>, transform_indices = @transform_4, window_bounds = array<i64: 1, 64>}, {pipeline_mode = #tpu.pipeline_mode<synchronous>, transform_indices = @transform_5, window_bounds = array<i64: 64, 128>}, {pipeline_mode = #tpu.pipeline_mode<synchronous>, transform_indices = @transform_6, window_bounds = array<i64: 1, 128>}, {transform_indices = @transform_7, window_bounds = array<i64: 8, 128>}]} {
    %c0 = arith.constant 0 : index
    %c0_0 = arith.constant 0 : index
    %0 = vector.load %arg1[%c0, %c0_0] : memref<8x4xf32, #tpu.memory_space<vmem>>, vector<8x4xf32>
    %c0_1 = arith.constant 0 : index
    %c0_2 = arith.constant 0 : index
    %1 = vector.load %arg2[%c0_1, %c0_2] : memref<4x64xf32, #tpu.memory_space<vmem>>, vector<4x64xf32>
    %2 = vector.extract_strided_slice %0 {offsets = [0, 0], sizes = [8, 1], strides = [1, 1]} : vector<8x4xf32> to vector<8x1xf32>
    %3 = vector.extract_strided_slice %1 {offsets = [0, 0], sizes = [1, 64], strides = [1, 1]} : vector<4x64xf32> to vector<1x64xf32>
    %4 = vector.broadcast %2 : vector<8x1xf32> to vector<8x64xf32>
    %5 = vector.broadcast %3 : vector<1x64xf32> to vector<8x64xf32>
    %6 = arith.mulf %4, %5 : vector<8x64xf32>
    %7 = vector.extract_strided_slice %0 {offsets = [0, 1], sizes = [8, 1], strides = [1, 1]} : vector<8x4xf32> to vector<8x1xf32>
    %8 = vector.extract_strided_slice %1 {offsets = [1, 0], sizes = [1, 64], strides = [1, 1]} : vector<4x64xf32> to vector<1x64xf32>
    %9 = vector.broadcast %7 : vector<8x1xf32> to vector<8x64xf32>
    %10 = vector.broadcast %8 : vector<1x64xf32> to vector<8x64xf32>
    %11 = arith.mulf %9, %10 : vector<8x64xf32>
    %12 = arith.addf %6, %11 : vector<8x64xf32>
    %13 = vector.extract_strided_slice %0 {offsets = [0, 2], sizes = [8, 1], strides = [1, 1]} : vector<8x4xf32> to vector<8x1xf32>
    %14 = vector.extract_strided_slice %1 {offsets = [2, 0], sizes = [1, 64], strides = [1, 1]} : vector<4x64xf32> to vector<1x64xf32>
    %15 = vector.broadcast %13 : vector<8x1xf32> to vector<8x64xf32>
    %16 = vector.broadcast %14 : vector<1x64xf32> to vector<8x64xf32>
    %17 = arith.mulf %15, %16 : vector<8x64xf32>
    %18 = arith.addf %12, %17 : vector<8x64xf32>
    %19 = vector.extract_strided_slice %0 {offsets = [0, 3], sizes = [8, 1], strides = [1, 1]} : vector<8x4xf32> to vector<8x1xf32>
    %20 = vector.extract_strided_slice %1 {offsets = [3, 0], sizes = [1, 64], strides = [1, 1]} : vector<4x64xf32> to vector<1x64xf32>
    %21 = vector.broadcast %19 : vector<8x1xf32> to vector<8x64xf32>
    %22 = vector.broadcast %20 : vector<1x64xf32> to vector<8x64xf32>
    %23 = arith.mulf %21, %22 : vector<8x64xf32>
    %24 = arith.addf %18, %23 : vector<8x64xf32>
    %c0_3 = arith.constant 0 : index
    %c0_4 = arith.constant 0 : index
    %25 = vector.load %arg3[%c0_3, %c0_4] : memref<1x64xf32, #tpu.memory_space<vmem>>, vector<1x64xf32>
    %26 = vector.broadcast %25 : vector<1x64xf32> to vector<8x64xf32>
    %27 = arith.addf %24, %26 : vector<8x64xf32>
    %28 = math.tanh %27 : vector<8x64xf32>
    %29 = arith.truncf %28 : vector<8x64xf32> to vector<8x64xbf16>
    %c0_5 = arith.constant 0 : index
    %c0_6 = arith.constant 0 : index
    %30 = vector.load %arg4[%c0_5, %c0_6] : memref<64x64xbf16, #tpu.memory_space<vmem>>, vector<64x64xbf16>
    %cst = arith.constant dense<0.000000e+00> : vector<8x64xf32>
    %31 = tpu.matmul %29, %30, %cst {dimension_numbers = #tpu.dot_dimension_numbers<[1], [0], [0], [1], [0, 0, 1, 1], [], []>} : vector<8x64xbf16>, vector<64x64xbf16>, vector<8x64xf32> -> vector<8x64xf32>
    %c0_7 = arith.constant 0 : index
    %c0_8 = arith.constant 0 : index
    %32 = vector.load %arg5[%c0_7, %c0_8] : memref<1x64xf32, #tpu.memory_space<vmem>>, vector<1x64xf32>
    %33 = vector.broadcast %32 : vector<1x64xf32> to vector<8x64xf32>
    %34 = arith.addf %31, %33 : vector<8x64xf32>
    %35 = math.tanh %34 : vector<8x64xf32>
    %36 = arith.truncf %35 : vector<8x64xf32> to vector<8x64xbf16>
    %c0_9 = arith.constant 0 : index
    %c0_10 = arith.constant 0 : index
    %37 = vector.load %arg6[%c0_9, %c0_10] : memref<64x128xbf16, #tpu.memory_space<vmem>>, vector<64x128xbf16>
    %cst_11 = arith.constant dense<0.000000e+00> : vector<8x128xf32>
    %38 = tpu.matmul %36, %37, %cst_11 {dimension_numbers = #tpu.dot_dimension_numbers<[1], [0], [0], [1], [0, 0, 1, 1], [], []>} : vector<8x64xbf16>, vector<64x128xbf16>, vector<8x128xf32> -> vector<8x128xf32>
    %c0_12 = arith.constant 0 : index
    %c0_13 = arith.constant 0 : index
    %39 = vector.load %arg7[%c0_12, %c0_13] : memref<1x128xf32, #tpu.memory_space<vmem>>, vector<1x128xf32>
    %40 = vector.broadcast %39 : vector<1x128xf32> to vector<8x128xf32>
    %41 = arith.addf %38, %40 : vector<8x128xf32>
    %c0_14 = arith.constant 0 : index
    %c0_15 = arith.constant 0 : index
    %42 = vector.load %arg8[%c0_14, %c0_15] : memref<8x128xf32, #tpu.memory_space<vmem>>, vector<8x128xf32>
    tpu.vector_store %arg8[%c0_14, %c0_15], %41 {strides = array<i32>} : memref<8x128xf32, #tpu.memory_space<vmem>>, vector<8x128xf32>,
    return
  }
  func.func @transform_0(%arg0: i32) -> (i32, i32) {
    %c0_i32 = arith.constant 0 : i32
    %c0_i32_0 = arith.constant 0 : i32
    return %arg0, %c0_i32 : i32, i32
  }
  func.func @transform_1(%arg0: i32) -> (i32, i32) {
    %c0_i32 = arith.constant 0 : i32
    %c0_i32_0 = arith.constant 0 : i32
    %c0_i32_1 = arith.constant 0 : i32
    return %c0_i32, %c0_i32_0 : i32, i32
  }
  func.func @transform_2(%arg0: i32) -> (i32, i32) {
    %c0_i32 = arith.constant 0 : i32
    %c0_i32_0 = arith.constant 0 : i32
    %c0_i32_1 = arith.constant 0 : i32
    return %c0_i32, %c0_i32_0 : i32, i32
  }
  func.func @transform_3(%arg0: i32) -> (i32, i32) {
    %c0_i32 = arith.constant 0 : i32
    %c0_i32_0 = arith.constant 0 : i32
    %c0_i32_1 = arith.constant 0 : i32
    return %c0_i32, %c0_i32_0 : i32, i32
  }
  func.func @transform_4(%arg0: i32) -> (i32, i32) {
    %c0_i32 = arith.constant 0 : i32
    %c0_i32_0 = arith.constant 0 : i32
    %c0_i32_1 = arith.constant 0 : i32
    return %c0_i32, %c0_i32_0 : i32, i32
  }
  func.func @transform_5(%arg0: i32) -> (i32, i32) {
    %c0_i32 = arith.constant 0 : i32
    %c0_i32_0 = arith.constant 0 : i32
    %c0_i32_1 = arith.constant 0 : i32
    return %c0_i32, %c0_i32_0 : i32, i32
  }
  func.func @transform_6(%arg0: i32) -> (i32, i32) {
    %c0_i32 = arith.constant 0 : i32
    %c0_i32_0 = arith.constant 0 : i32
    %c0_i32_1 = arith.constant 0 : i32
    return %c0_i32, %c0_i32_0 : i32, i32
  }
  func.func @transform_7(%arg0: i32) -> (i32, i32) {
    %c0_i32 = arith.constant 0 : i32
    %c0_i32_0 = arith.constant 0 : i32
    return %arg0, %c0_i32 : i32, i32
  }
}

</mosaic_0001>

<llo_original>
// kernel: tpu_custom_call.1
$region0: #{tpu_custom_call.1}
  #allocation0 [shape = 'u32[]', space=smem, size = 0x4, offset = 0x4, fixed_abs, tag = 'smem constant byte address 0x4 - core index']
  #allocation1 [shape = 'u32[144,128]{1,0:T(1,128)}', space=vmem, size = 0x12000, scoped, tag = 'internal scratch']
  %s0 = inlined_call_operand.vmem [shape: f32[8,4], index: 0, kind: input, shape index: {}]
  %s1 = inlined_call_operand.vmem [shape: f32[4,64], index: 1, kind: input, shape index: {}]
  %s2 = inlined_call_operand.vmem [shape: f32[1,64], index: 2, kind: input, shape index: {}]
  %s3 = inlined_call_operand.hbm [shape: bf16[64,64], index: 3, kind: input, shape index: {}]
  %s4 = inlined_call_operand.vmem [shape: f32[1,64], index: 4, kind: input, shape index: {}]
  %s5 = inlined_call_operand.hbm [shape: bf16[64,128], index: 5, kind: input, shape index: {}]
  %s6 = inlined_call_operand.vmem [shape: f32[1,128], index: 6, kind: input, shape index: {}]
  %s7 = inlined_call_operand.hbm [shape: f32[8,128], index: 7, kind: output, shape index: {}]
  %s8 = sld [smem:[#allocation0]]
  $region46: #{tpu_custom_call.1} parent=0
    _
  %s10 = ssub.s32 1, %s8
  %s11 = scalar_select 0, %s10, %s8
  $region1: #{tpu_custom_call.1} parent=0
    #allocation2 [shape = 'u8[16384]{0}', space=vmem, size = 0x4000, scoped, tag = 'input window, operand 3, single buffered']
    #allocation3 [shape = 's32[1]{0}', space=sflag, size = 0x4, scoped, tag = 'scoped memory for tpu_custom_call.1']
    #allocation4 [shape = 's32[1]{0}', space=sflag, size = 0x4, scoped, tag = 'scoped memory for tpu_custom_call.1']
    #allocation5 [shape = 'u8[16384]{0}', space=vmem, size = 0x4000, scoped, tag = 'input window, operand 5, single buffered']
    #allocation6 [shape = 's32[1]{0}', space=sflag, size = 0x4, scoped, tag = 'scoped memory for tpu_custom_call.1']
    #allocation7 [shape = 'u8[4096]{0}', space=vmem, size = 0x1000, scoped, tag = 'output window, operand 0, single buffered']
    %12 = vsyncpa [#allocation3], 0
    %13 = vsyncpa [#allocation6], 0
    %14 = vsyncpa [#allocation4], 0
    // Predicated region
    $region2: #{tpu_custom_call.1} parent=1 // pred_check
      _
    $region3: #{tpu_custom_call.1} parent=1 // pred_check_branch
      %16 = sbr.rel (0) target = $region5
    $region4: #{tpu_custom_call.1} parent=1 // pred_region
      _
    $region5: #{tpu_custom_call.1} parent=1 // pred_fallthru
      _
    // Predicated region
    $region6: #{tpu_custom_call.1} parent=1 // pred_check
      _
    $region7: #{tpu_custom_call.1} parent=1 // pred_check_branch
      %18 = sbr.rel (0) target = $region9
    $region8: #{tpu_custom_call.1} parent=1 // pred_region
      _
    $region9: #{tpu_custom_call.1} parent=1 // pred_fallthru
      _
    // Predicated region
    $region10: #{tpu_custom_call.1} parent=1 // pred_check
      _
    $region11: #{tpu_custom_call.1} parent=1 // pred_check_branch
      %20 = sbr.rel (0) target = $region13
    $region12: #{tpu_custom_call.1} parent=1 // pred_region
      _
    $region13: #{tpu_custom_call.1} parent=1 // pred_fallthru
      _
    // Predicated region
    $region14: #{tpu_custom_call.1} parent=1 // pred_check
      _
    $region15: #{tpu_custom_call.1} parent=1 // pred_check_branch
      %22 = sbr.rel (0) target = $region17
    $region16: #{tpu_custom_call.1} parent=1 // pred_region
      %s24 = ssub.s32 512, 512
      %25 = vsyncadd [#allocation3], %s24
      %s26 = sshll.u32 [#allocation2], 4
      %s27 = int_to_ptr.vmem [resolvable:$true] %s26
      %32 = dma.hbm_to_vmem [thread:$0]  %s3, 512, %s27, [#allocation3], 64, 64, 4
    $region17: #{tpu_custom_call.1} parent=1 // pred_fallthru
      _
    // Predicated region
    $region18: #{tpu_custom_call.1} parent=1 // pred_check
      _
    $region19: #{tpu_custom_call.1} parent=1 // pred_check_branch
      %34 = sbr.rel (0) target = $region21
    $region20: #{tpu_custom_call.1} parent=1 // pred_region
      _
    $region21: #{tpu_custom_call.1} parent=1 // pred_fallthru
      _
    // Predicated region
    $region22: #{tpu_custom_call.1} parent=1 // pred_check
      _
    $region23: #{tpu_custom_call.1} parent=1 // pred_check_branch
      %36 = sbr.rel (0) target = $region25
    $region24: #{tpu_custom_call.1} parent=1 // pred_region
      %s38 = ssub.s32 512, 512
      %39 = vsyncadd [#allocation6], %s38
      %s40 = sshll.u32 [#allocation5], 4
      %s41 = int_to_ptr.vmem [resolvable:$true] %s40
      %46 = dma.hbm_to_vmem [thread:$0]  %s5, 512, %s41, [#allocation6], 64, 64, 4
    $region25: #{tpu_custom_call.1} parent=1 // pred_fallthru
      _
    // Predicated region
    $region26: #{tpu_custom_call.1} parent=1 // pred_check
      _
    $region27: #{tpu_custom_call.1} parent=1 // pred_check_branch
      %48 = sbr.rel (0) target = $region29
    $region28: #{tpu_custom_call.1} parent=1 // pred_region
      _
    $region29: #{tpu_custom_call.1} parent=1 // pred_fallthru
      _
    // Predicated region
    $region30: #{tpu_custom_call.1} parent=1 // pred_check
      _
    $region31: #{tpu_custom_call.1} parent=1 // pred_check_branch
      %50 = sbr.rel (0) target = $region33
    $region32: #{tpu_custom_call.1} parent=1 // pred_region
      %51 = dma.done [#allocation3], 512
    $region33: #{tpu_custom_call.1} parent=1 // pred_fallthru
      _
    // Predicated region
    $region34: #{tpu_custom_call.1} parent=1 // pred_check
      _
    $region35: #{tpu_custom_call.1} parent=1 // pred_check_branch
      %53 = sbr.rel (0) target = $region37
    $region36: #{tpu_custom_call.1} parent=1 // pred_region
      %54 = dma.done [#allocation6], 512
    $region37: #{tpu_custom_call.1} parent=1 // pred_fallthru
      _
    %v56 = vld [vmem:[%s0] sm:$0xff]
    %v57 = vld [vmem:[%s1] sm:$0xf]
    %59 = vset.pattern.permute.xlu0 0
    %60 = vperm.xlu0 %59, %v56
    %v61 = vpop.permute.xlu0 %60
    %v63 = vlaneseq
    %v64 = vshrl.u32 %v63, 7
    %v65 = vsub.s32 0, %v64
    %v66 = vrot.slane %v57, %v65
    %v67 = vmul.f32 %v61, %v66
    %68 = vset.pattern.permute.xlu0 1
    %69 = vperm.xlu0 %68, %v56
    %v70 = vpop.permute.xlu0 %69
    %v72 = vlaneseq
    %v73 = vshrl.u32 %v72, 7
    %v74 = vsub.s32 1, %v73
    %v75 = vrot.slane %v57, %v74
    %v76 = vmul.f32 %v70, %v75
    %v77 = vadd.f32 %v67, %v76
    %78 = vset.pattern.permute.xlu0 2
    %79 = vperm.xlu0 %78, %v56
    %v80 = vpop.permute.xlu0 %79
    %v82 = vlaneseq
    %v83 = vshrl.u32 %v82, 7
    %v84 = vsub.s32 2, %v83
    %v85 = vrot.slane %v57, %v84
    %v86 = vmul.f32 %v80, %v85
    %v87 = vadd.f32 %v77, %v86
    %88 = vset.pattern.permute.xlu0 3
    %89 = vperm.xlu0 %88, %v56
    %v90 = vpop.permute.xlu0 %89
    %v92 = vlaneseq
    %v93 = vshrl.u32 %v92, 7
    %v94 = vsub.s32 3, %v93
    %v95 = vrot.slane %v57, %v94
    %v96 = vmul.f32 %v90, %v95
    %v97 = vadd.f32 %v87, %v96
    %v98 = vld [vmem:[%s2] sm:$0x1]
    %v100 = vlaneseq
    %v101 = vshrl.u32 %v100, 7
    %v102 = vsub.s32 0, %v101
    %v103 = vrot.slane %v98, %v102
    %v105 = vadd.f32 %v97, %v103
    %v106 = vtanh.pop %v105
    %v107 = vpack.c.bf16 %v106, %v106
    %v108 = vld [vmem:[#allocation2] sm:$0xf]
    %v109 = vld [vmem:[#allocation2 + $0x4] sm:$0xf]
    %v110 = vld [vmem:[#allocation2 + $0x8] sm:$0xf]
    %v111 = vld [vmem:[#allocation2 + $0xc] sm:$0xf]
    %v112 = vld [vmem:[#allocation2 + $0x10] sm:$0xf]
    %v113 = vld [vmem:[#allocation2 + $0x14] sm:$0xf]
    %v114 = vld [vmem:[#allocation2 + $0x18] sm:$0xf]
    %v115 = vld [vmem:[#allocation2 + $0x1c] sm:$0xf]
    %v116 = vld [vmem:[%s4] sm:$0x1]
    %v118 = vlaneseq
    %v119 = vshrl.u32 %v118, 7
    %v120 = vsub.s32 0, %v119
    %v121 = vrot.slane %v116, %v120
    %v131 = vunpack.c.l.b16 %v108
    %v132 = vunpack.c.l.b16 %v109
    %v133 = vunpack.c.l.b16 %v110
    %v134 = vunpack.c.l.b16 %v111
    %v135 = vunpack.c.l.b16 %v112
    %v136 = vunpack.c.l.b16 %v113
    %v137 = vunpack.c.l.b16 %v114
    %v138 = vunpack.c.l.b16 %v115
    %v139 = vpack.c.b16 %v132, %v131
    %v140 = vpack.c.b16 %v134, %v133
    %v141 = vpack.c.b16 %v136, %v135
    %v142 = vpack.c.b16 %v138, %v137
    %vm147 = vcmask 523264
    %v149 = vsel %vm147, %v107, 0
    %151 = vmatprep.subr.bf16.mxu0 0
    %152 = vmatpush1.bf16.msra.mxu0 0
    %153 = vmatprep.subr.bf16.mxu0 0
    %154 = vmatpush1.bf16.msra.mxu0 0
    %155 = vmatprep.subr.bf16.mxu0 0
    %156 = vmatpush1.bf16.msra.mxu0 0
    %157 = vmatprep.subr.bf16.mxu0 0
    %158 = vmatpush1.bf16.msra.mxu0 0
    %159 = vmatprep.subr.bf16.mxu0 0
    %160 = vmatpush1.bf16.msra.mxu0 %v142
    %161 = vmatprep.subr.bf16.mxu0 0
    %162 = vmatpush1.bf16.msra.mxu0 %v141
    %163 = vmatprep.subr.bf16.mxu0 0
    %164 = vmatpush1.bf16.msra.mxu0 %v140
    %165 = vmatprep.subr.bf16.mxu0 0
    %166 = vmatpush1.bf16.msra.mxu0 %v139
    %167 = vmatprep.subr.bf16.mxu0 0
    %168 = vmatpush2.bf16.msra.mxu0 0
    %169 = vmatprep.subr.bf16.mxu0 0
    %170 = vmatpush2.bf16.msra.mxu0 0
    %171 = vmatprep.subr.bf16.mxu0 0
    %172 = vmatpush2.bf16.msra.mxu0 0
    %173 = vmatprep.subr.bf16.mxu0 0
    %174 = vmatpush2.bf16.msra.mxu0 0
    %175 = vmatprep.subr.bf16.mxu0 0
    %176 = vmatpush2.bf16.msra.mxu0 0
    %177 = vmatprep.subr.bf16.mxu0 0
    %178 = vmatpush2.bf16.msra.mxu0 0
    %179 = vmatprep.subr.bf16.mxu0 0
    %180 = vmatpush2.bf16.msra.mxu0 0
    %181 = vmatprep.subr.bf16.mxu0 0
    %182 = vmatpush2.bf16.msra.mxu0 0
    %183 = vmatprep.mubr.bf16.mxu0 0
    %184 = vmatmul.mubr.bf16.gmra.mxu0 %v149
    %v185 = vpop.f32.mrf.mxu0
    %v186 = vadd.f32 %v121, %v185
    %v187 = vpop.f32.mrf.mxu0
    %v188 = vpop.f32.mrf.mxu0
    %v189 = vpop.f32.mrf.mxu0
    %190 = vdwg.mxu0
    %v191 = vtanh.pop %v186
    %v192 = vpack.c.bf16 %v191, %v191
    %v193 = vld [vmem:[#allocation5] sm:$0xf]
    %v194 = vld [vmem:[#allocation5 + $0x4] sm:$0xf]
    %v195 = vld [vmem:[#allocation5 + $0x8] sm:$0xf]
    %v196 = vld [vmem:[#allocation5 + $0xc] sm:$0xf]
    %v197 = vld [vmem:[#allocation5 + $0x10] sm:$0xf]
    %v198 = vld [vmem:[#allocation5 + $0x14] sm:$0xf]
    %v199 = vld [vmem:[#allocation5 + $0x18] sm:$0xf]
    %v200 = vld [vmem:[#allocation5 + $0x1c] sm:$0xf]
    %v201 = vld [vmem:[%s6] sm:$0x1]
    %v203 = vlaneseq
    %v204 = vshrl.u32 %v203, 7
    %v205 = vsub.s32 0, %v204
    %v206 = vrot.slane %v201, %v205
    %v216 = vunpack.c.l.b16 %v193
    %v217 = vunpack.c.l.b16 %v194
    %v218 = vunpack.c.l.b16 %v195
    %v219 = vunpack.c.l.b16 %v196
    %v220 = vunpack.c.l.b16 %v197
    %v221 = vunpack.c.l.b16 %v198
    %v222 = vunpack.c.l.b16 %v199
    %v223 = vunpack.c.l.b16 %v200
    %v224 = vpack.c.b16 %v217, %v216
    %v225 = vpack.c.b16 %v219, %v218
    %v226 = vpack.c.b16 %v221, %v220
    %v227 = vpack.c.b16 %v223, %v222
    %v233 = vsel %vm147, %v192, 0
    %235 = vmatprep.subr.bf16.mxu0 0
    %236 = vmatpush1.bf16.msra.mxu0 0
    %237 = vmatprep.subr.bf16.mxu0 0
    %238 = vmatpush1.bf16.msra.mxu0 0
    %239 = vmatprep.subr.bf16.mxu0 0
    %240 = vmatpush1.bf16.msra.mxu0 0
    %241 = vmatprep.subr.bf16.mxu0 0
    %242 = vmatpush1.bf16.msra.mxu0 0
    %243 = vmatprep.subr.bf16.mxu0 0
    %244 = vmatpush1.bf16.msra.mxu0 %v227
    %245 = vmatprep.subr.bf16.mxu0 0
    %246 = vmatpush1.bf16.msra.mxu0 %v226
    %247 = vmatprep.subr.bf16.mxu0 0
    %248 = vmatpush1.bf16.msra.mxu0 %v225
    %249 = vmatprep.subr.bf16.mxu0 0
    %250 = vmatpush1.bf16.msra.mxu0 %v224
    %251 = vmatprep.subr.bf16.mxu0 0
    %252 = vmatpush2.bf16.msra.mxu0 0
    %253 = vmatprep.subr.bf16.mxu0 0
    %254 = vmatpush2.bf16.msra.mxu0 0
    %255 = vmatprep.subr.bf16.mxu0 0
    %256 = vmatpush2.bf16.msra.mxu0 0
    %257 = vmatprep.subr.bf16.mxu0 0
    %258 = vmatpush2.bf16.msra.mxu0 0
    %259 = vmatprep.subr.bf16.mxu0 0
    %260 = vmatpush2.bf16.msra.mxu0 0
    %261 = vmatprep.subr.bf16.mxu0 0
    %262 = vmatpush2.bf16.msra.mxu0 0
    %263 = vmatprep.subr.bf16.mxu0 0
    %264 = vmatpush2.bf16.msra.mxu0 0
    %265 = vmatprep.subr.bf16.mxu0 0
    %266 = vmatpush2.bf16.msra.mxu0 0
    %267 = vmatprep.mubr.bf16.mxu0 0
    %268 = vmatmul.mubr.bf16.gmra.mxu0 %v233
    %v269 = vpop.f32.mrf.mxu0
    %v270 = vadd.f32 %v206, %v269
    %v271 = vpop.f32.mrf.mxu0
    %v272 = vpop.f32.mrf.mxu0
    %v273 = vpop.f32.mrf.mxu0
    %274 = vdwg.mxu0
    %275 = vst [vmem:[#allocation7] sm:$0xff] %v270
    // Predicated region
    $region38: #{tpu_custom_call.1} parent=1 // pred_check
      _
    $region39: #{tpu_custom_call.1} parent=1 // pred_check_branch
      %277 = sbr.rel (0) target = $region41
    $region40: #{tpu_custom_call.1} parent=1 // pred_region
      %s279 = ssub.s32 128, 128
      %280 = vsyncadd [#allocation4], %s279
      %s282 = sshll.u32 [#allocation7], 4
      %s283 = int_to_ptr.vmem [resolvable:$true] %s282
      %285 = dma.vmem_to_hbm [thread:$0]  %s283, 128, %s7, [#allocation4]
    $region41: #{tpu_custom_call.1} parent=1 // pred_fallthru
      _
    // Predicated region
    $region42: #{tpu_custom_call.1} parent=1 // pred_check
      _
    $region43: #{tpu_custom_call.1} parent=1 // pred_check_branch
      %287 = sbr.rel (0) target = $region45
    $region44: #{tpu_custom_call.1} parent=1 // pred_region
      %288 = dma.done [#allocation4], 128
    $region45: #{tpu_custom_call.1} parent=1 // pred_fallthru
      _
    %289 = vsyncpa [#allocation3], 1
    %290 = vsyncpa [#allocation6], 1
    %291 = vsyncpa [#allocation4], 1

</llo_original>
